<compile_context>
chip_gen: v7x
topology: tpu7x:2x2x1
jax: 0.10.0
libtpu: 0.0.40
codegen_flags: <defaults>
</compile_context>

<pallas_src>
import functools
import math

import jax
import jax.numpy as jnp
from jax import lax
from jax.experimental import pallas as pl
from jax.experimental.pallas import tpu as pltpu


def _round_up(x, m):
    return (x + m - 1) // m * m


def _vmem_capacity_bytes():
    """Physical VMEM per TensorCore; conservative fallback if the query fails."""
    try:
        cap = getattr(pltpu.get_tpu_info(), "vmem_capacity_bytes", None)
        if cap:
            return int(cap)
    except Exception:
        pass
    return 64 * 1024 * 1024  # v7x-sized fallback: safe on every generation


def _gelu_f32(h, approx):
    if approx:
        # tanh approximation: native EUP op (frees VALU slots); matches
        # torch.nn.GELU(approximate="tanh"), so gated behind a flag.
        c = math.sqrt(2.0 / math.pi)
        return 0.5 * h * (1.0 + jnp.tanh(c * (h + 0.044715 * h * h * h)))
    # exact erf-based GELU -- torch.nn.GELU() default semantics
    return 0.5 * h * (1.0 + lax.erf(h * (1.0 / math.sqrt(2.0))))


def _ffn_resident_kernel(x_ref, w1_ref, b1_ref, w2_ref, b2_ref, o_ref, *, approx_gelu):
    # Weights fully VMEM-resident: single F step, no accumulator scratch.
    h = jnp.dot(x_ref[...], w1_ref[...], preferred_element_type=jnp.float32)
    h = h + b1_ref[...].astype(jnp.float32)
    h = _gelu_f32(h, approx_gelu)
    out = jnp.dot(h.astype(w2_ref.dtype), w2_ref[...],
                  preferred_element_type=jnp.float32)
    out = out + b2_ref[...].astype(jnp.float32)
    o_ref[...] = out.astype(o_ref.dtype)


def _ffn_tiled_kernel(x_ref, w1_ref, b1_ref, w2_ref, b2_ref, o_ref, acc_ref, *, approx_gelu):
    # Hidden dim F tiled on grid axis 1; f32 accumulator resident per row tile.
    f = pl.program_id(1)

    @pl.when(f == 0)
    def _():
        # seed the accumulator with the second-layer bias
        acc_ref[...] = jnp.broadcast_to(
            b2_ref[...].astype(jnp.float32), acc_ref.shape)

    h = jnp.dot(x_ref[...], w1_ref[...], preferred_element_type=jnp.float32)
    h = h + b1_ref[...].astype(jnp.float32)
    h = _gelu_f32(h, approx_gelu)
    acc_ref[...] += jnp.dot(h.astype(w2_ref.dtype), w2_ref[...],
                            preferred_element_type=jnp.float32)

    @pl.when(f == pl.num_programs(1) - 1)
    def _():
        o_ref[...] = acc_ref[...].astype(o_ref.dtype)


def _pick_tiles(R, M, F, itemsize, budget, row_tile=None, f_tile=None):
    """Return (tr, tf, M_pad, F_pad, resident, footprint_bytes)."""
    # min sublane tile: 8 for 32-bit, 16 for 16-bit, 32 for 8-bit dtypes
    sub = 8 if itemsize >= 4 else (16 if itemsize == 2 else 32)
    M_pad = _round_up(M, 128)
    F_full = _round_up(F, 128)
    R_cap = _round_up(max(R, 1), sub)

    def footprint(tr, tf, resident):
        blocks = 2 * itemsize * (2 * M_pad * tf        # W1 + W2 tiles (double-buffered)
                                 + 2 * tr * M_pad      # x + out tiles (double-buffered)
                                 + 8 * tf + 8 * M_pad)  # biases (8-sublane padded)
        interm = tr * tf * (4 + itemsize)              # f32 hidden + cast for 2nd matmul
        acc = 0 if resident else tr * M_pad * 4        # f32 accumulator scratch
        return blocks + interm + acc

    if row_tile is not None or f_tile is not None:
        # Explicit override -> always the F-tiled accumulator kernel.
        tr = min(_round_up(int(row_tile or 256), sub), R_cap)
        tf = min(_round_up(int(f_tile or 512), 128), F_full)
        return tr, tf, M_pad, _round_up(F, tf), False, footprint(tr, tf, False)

    row_opts = sorted({min(sub * k, R_cap) for k in (64, 32, 16, 8, 4, 2, 1)},
                      reverse=True)

    # 1) Weights-resident fast path: W1/W2 DMA'd once, kept in VMEM for all rows.
    for tr in row_opts:
        fp = footprint(tr, F_full, True)
        if fp <= budget:
            return tr, F_full, M_pad, F_full, True, fp

    # 2) F-tiled path: prefer the largest row tile (weight streaming ~ 1/tr),
    #    then the largest hidden tile that still fits the budget.
    for tr in row_opts:
        for tf in (1024, 512, 256, 128):
            tf = min(tf, F_full)
            fp = footprint(tr, tf, False)
            if fp <= budget:
                return tr, tf, M_pad, _round_up(F, tf), False, fp

    # 3) Last resort: smallest tiles (vmem_limit will still be raised for it).
    tr, tf = row_opts[-1], min(128, F_full)
    return tr, tf, M_pad, _round_up(F, tf), False, footprint(tr, tf, False)


@functools.partial(jax.jit, static_argnames=("row_tile", "f_tile", "approx_gelu"))
def feedforward(x, w1, b1, w2, b2, *, row_tile=None, f_tile=None, approx_gelu=False):
    """x: (N, K, M) -> (N, K, M). Weights stored transposed vs torch:
    w1 (M, F), b1 (F,), w2 (F, M), b2 (M,)."""
    N, K, M = x.shape
    F = w1.shape[1]
    R = N * K
    dtype = x.dtype
    itemsize = jnp.dtype(dtype).itemsize

    vmem_cap = _vmem_capacity_bytes()
    budget = int(vmem_cap * 0.8)  # headroom for Mosaic internal scratch

    tr, tf, M_pad, F_pad, resident, fp = _pick_tiles(
        R, M, F, itemsize, budget, row_tile=row_tile, f_tile=f_tile)
    R_pad = _round_up(R, tr)

    # Zero padding is exact: gelu(0) == 0 and padded weight rows/cols are zero,
    # so padded slices contribute nothing; padded rows/cols are sliced off below.
    x2d = x.reshape(R, M)
    if (R_pad, M_pad) != (R, M):
        x2d = jnp.pad(x2d, ((0, R_pad - R), (0, M_pad - M)))
    w1p = jnp.pad(w1, ((0, M_pad - M), (0, F_pad - F))) if (M_pad, F_pad) != (M, F) else w1
    b1p = jnp.pad(b1, (0, F_pad - F)) if F_pad != F else b1
    w2p = jnp.pad(w2, ((0, F_pad - F), (0, M_pad - M))) if (F_pad, M_pad) != (F, M) else w2
    b2p = jnp.pad(b2, (0, M_pad - M)) if M_pad != M else b2
    b1_2d = b1p.reshape(1, F_pad)
    b2_2d = b2p.reshape(1, M_pad)

    n_row_steps = R_pad // tr
    weight_passes = 1 if resident else n_row_steps  # weights re-streamed per row tile
    cost = pl.CostEstimate(
        flops=4 * R_pad * M_pad * F_pad,             # two matmuls
        transcendentals=R_pad * F_pad,               # erf / tanh
        bytes_accessed=int(itemsize * (2 * R_pad * M_pad
                                       + weight_passes * 2 * M_pad * F_pad
                                       + F_pad + M_pad)),
    )

    vmem_limit = int(max(32 << 20, min(vmem_cap - (2 << 20), fp + (16 << 20))))

    if resident:
        grid = (n_row_steps,)
        in_specs = [
            pl.BlockSpec((tr, M_pad), lambda i: (i, 0)),      # x row tile
            pl.BlockSpec((M_pad, F_pad), lambda i: (0, 0)),   # W1 (resident)
            pl.BlockSpec((1, F_pad), lambda i: (0, 0)),       # b1 (resident)
            pl.BlockSpec((F_pad, M_pad), lambda i: (0, 0)),   # W2 (resident)
            pl.BlockSpec((1, M_pad), lambda i: (0, 0)),       # b2 (resident)
        ]
        out_spec = pl.BlockSpec((tr, M_pad), lambda i: (i, 0))
        scratch = []
        kernel = functools.partial(_ffn_resident_kernel, approx_gelu=approx_gelu)
        dim_sem = ("parallel",)
    else:
        grid = (n_row_steps, F_pad // tf)
        in_specs = [
            pl.BlockSpec((tr, M_pad), lambda i, f: (i, 0)),   # x row tile
            pl.BlockSpec((M_pad, tf), lambda i, f: (0, f)),   # W1 F-slice
            pl.BlockSpec((1, tf), lambda i, f: (0, f)),       # b1 F-slice
            pl.BlockSpec((tf, M_pad), lambda i, f: (f, 0)),   # W2 F-slice
            pl.BlockSpec((1, M_pad), lambda i, f: (0, 0)),    # b2
        ]
        out_spec = pl.BlockSpec((tr, M_pad), lambda i, f: (i, 0))
        scratch = [pltpu.VMEM((tr, M_pad), jnp.float32)]
        kernel = functools.partial(_ffn_tiled_kernel, approx_gelu=approx_gelu)
        dim_sem = ("parallel", "arbitrary")

    out2d = pl.pallas_call(
        kernel,
        out_shape=jax.ShapeDtypeStruct((R_pad, M_pad), dtype),
        grid_spec=pltpu.PrefetchScalarGridSpec(
            num_scalar_prefetch=0,
            grid=grid,
            in_specs=in_specs,
            out_specs=out_spec,
            scratch_shapes=scratch,
        ),
        compiler_params=pltpu.CompilerParams(
            dimension_semantics=dim_sem,
            vmem_limit_bytes=vmem_limit,
        ),
        cost_estimate=cost,
    )(x2d, w1p, b1_2d, w2p, b2_2d)

    return out2d[:R, :M].reshape(N, K, M)


def _reference(x, w1, b1, w2, b2):
    h = jnp.einsum("nkm,mf->nkf", x, w1) + b1
    h = 0.5 * h * (1.0 + lax.erf(h / jnp.sqrt(2.0).astype(h.dtype)))
    return jnp.einsum("nkf,fm->nkm", h, w2) + b2


if __name__ == "__main__":
    # small shapes: N batches, K sequence positions, M embedding dim, F hidden dim
    N, K, M, F = 2, 8, 32, 256

    key = jax.random.PRNGKey(0)
    kx, kw1, kb1, kw2, kb2 = jax.random.split(key, 5)

    x = jax.random.normal(kx, (N, K, M), dtype=jnp.float32)

    # deterministic parameter init (torch.nn.Linear-style uniform bounds)
    bound1 = 1.0 / math.sqrt(M)
    bound2 = 1.0 / math.sqrt(F)
    w1 = jax.random.uniform(kw1, (M, F), minval=-bound1, maxval=bound1, dtype=jnp.float32)
    b1 = jax.random.uniform(kb1, (F,), minval=-bound1, maxval=bound1, dtype=jnp.float32)
    w2 = jax.random.uniform(kw2, (F, M), minval=-bound2, maxval=bound2, dtype=jnp.float32)
    b2 = jax.random.uniform(kb2, (M,), minval=-bound2, maxval=bound2, dtype=jnp.float32)

    ref = _reference(x, w1, b1, w2, b2)

    # Auto path (small weights -> weights-resident 1-D grid kernel).
    out = jax.block_until_ready(feedforward(x, w1, b1, w2, b2))
    assert out.shape == (N, K, M), out.shape
    assert jnp.allclose(out, ref, atol=1e-4, rtol=1e-4), float(jnp.max(jnp.abs(out - ref)))

    # Force the F-tiled accumulator path too (exercises both kernels).
    out_t = jax.block_until_ready(feedforward(x, w1, b1, w2, b2, row_tile=8, f_tile=128))
    assert jnp.allclose(out_t, ref, atol=1e-4, rtol=1e-4), float(jnp.max(jnp.abs(out_t - ref)))

    print("KERNEL_OK")
</pallas_src>

<mosaic_0001>
module attributes {stable_mosaic.version = 11 : i64} {
  func.func @_ffn_resident_kernel(%arg0: i32, %arg1: memref<16x128xf32, #tpu.memory_space<vmem>>, %arg2: memref<128x256xf32, #tpu.memory_space<vmem>>, %arg3: memref<1x256xf32, #tpu.memory_space<vmem>>, %arg4: memref<256x128xf32, #tpu.memory_space<vmem>>, %arg5: memref<1x128xf32, #tpu.memory_space<vmem>>, %arg6: memref<16x128xf32, #tpu.memory_space<vmem>>) attributes {dimension_semantics = [#tpu.dimension_semantics<parallel>], iteration_bounds = array<i64: 1>, scalar_prefetch = 0 : i64, scratch_operands = 0 : i64, tpu.core_type = #tpu.core_type<tc>, window_params = [{transform_indices = @transform_0, window_bounds = array<i64: 16, 128>}, {pipeline_mode = #tpu.pipeline_mode<synchronous>, transform_indices = @transform_1, window_bounds = array<i64: 128, 256>}, {pipeline_mode = #tpu.pipeline_mode<synchronous>, transform_indices = @transform_2, window_bounds = array<i64: 1, 256>}, {pipeline_mode = #tpu.pipeline_mode<synchronous>, transform_indices = @transform_3, window_bounds = array<i64: 256, 128>}, {pipeline_mode = #tpu.pipeline_mode<synchronous>, transform_indices = @transform_4, window_bounds = array<i64: 1, 128>}, {transform_indices = @transform_5, window_bounds = array<i64: 16, 128>}]} {
    %c0 = arith.constant 0 : index
    %c0_0 = arith.constant 0 : index
    %0 = vector.load %arg1[%c0, %c0_0] : memref<16x128xf32, #tpu.memory_space<vmem>>, vector<16x128xf32>
    %c0_1 = arith.constant 0 : index
    %c0_2 = arith.constant 0 : index
    %1 = vector.load %arg2[%c0_1, %c0_2] : memref<128x256xf32, #tpu.memory_space<vmem>>, vector<128x256xf32>
    %cst = arith.constant dense<0.000000e+00> : vector<16x256xf32>
    %2 = tpu.matmul %0, %1, %cst {dimension_numbers = #tpu.dot_dimension_numbers<[1], [0], [0], [1], [0, 0, 1, 1], [], []>} : vector<16x128xf32>, vector<128x256xf32>, vector<16x256xf32> -> vector<16x256xf32>
    %c0_3 = arith.constant 0 : index
    %c0_4 = arith.constant 0 : index
    %3 = vector.load %arg3[%c0_3, %c0_4] : memref<1x256xf32, #tpu.memory_space<vmem>>, vector<1x256xf32>
    %4 = vector.broadcast %3 : vector<1x256xf32> to vector<16x256xf32>
    %5 = arith.addf %2, %4 : vector<16x256xf32>
    %cst_5 = arith.constant 5.000000e-01 : f32
    %6 = vector.broadcast %cst_5 : f32 to vector<16x256xf32>
    %7 = arith.mulf %6, %5 : vector<16x256xf32>
    %cst_6 = arith.constant 0.707106769 : f32
    %8 = vector.broadcast %cst_6 : f32 to vector<16x256xf32>
    %9 = arith.mulf %5, %8 : vector<16x256xf32>
    %10 = math.erf %9 : vector<16x256xf32>
    %cst_7 = arith.constant 1.000000e+00 : f32
    %11 = vector.broadcast %cst_7 : f32 to vector<16x256xf32>
    %12 = arith.addf %11, %10 : vector<16x256xf32>
    %13 = arith.mulf %7, %12 : vector<16x256xf32>
    %c0_8 = arith.constant 0 : index
    %c0_9 = arith.constant 0 : index
    %14 = vector.load %arg4[%c0_8, %c0_9] : memref<256x128xf32, #tpu.memory_space<vmem>>, vector<256x128xf32>
    %cst_10 = arith.constant dense<0.000000e+00> : vector<16x128xf32>
    %15 = tpu.matmul %13, %14, %cst_10 {dimension_numbers = #tpu.dot_dimension_numbers<[1], [0], [0], [1], [0, 0, 1, 1], [], []>} : vector<16x256xf32>, vector<256x128xf32>, vector<16x128xf32> -> vector<16x128xf32>
    %c0_11 = arith.constant 0 : index
    %c0_12 = arith.constant 0 : index
    %16 = vector.load %arg5[%c0_11, %c0_12] : memref<1x128xf32, #tpu.memory_space<vmem>>, vector<1x128xf32>
    %17 = vector.broadcast %16 : vector<1x128xf32> to vector<16x128xf32>
    %18 = arith.addf %15, %17 : vector<16x128xf32>
    %c0_13 = arith.constant 0 : index
    %c0_14 = arith.constant 0 : index
    %19 = vector.load %arg6[%c0_13, %c0_14] : memref<16x128xf32, #tpu.memory_space<vmem>>, vector<16x128xf32>
    tpu.vector_store %arg6[%c0_13, %c0_14], %18 {strides = array<i32>} : memref<16x128xf32, #tpu.memory_space<vmem>>, vector<16x128xf32>,
    return
  }
  func.func @transform_0(%arg0: i32) -> (i32, i32) {
    %c0_i32 = arith.constant 0 : i32
    %c0_i32_0 = arith.constant 0 : i32
    return %arg0, %c0_i32 : i32, i32
  }
  func.func @transform_1(%arg0: i32) -> (i32, i32) {
    %c0_i32 = arith.constant 0 : i32
    %c0_i32_0 = arith.constant 0 : i32
    %c0_i32_1 = arith.constant 0 : i32
    return %c0_i32, %c0_i32_0 : i32, i32
  }
  func.func @transform_2(%arg0: i32) -> (i32, i32) {
    %c0_i32 = arith.constant 0 : i32
    %c0_i32_0 = arith.constant 0 : i32
    %c0_i32_1 = arith.constant 0 : i32
    return %c0_i32, %c0_i32_0 : i32, i32
  }
  func.func @transform_3(%arg0: i32) -> (i32, i32) {
    %c0_i32 = arith.constant 0 : i32
    %c0_i32_0 = arith.constant 0 : i32
    %c0_i32_1 = arith.constant 0 : i32
    return %c0_i32, %c0_i32_0 : i32, i32
  }
  func.func @transform_4(%arg0: i32) -> (i32, i32) {
    %c0_i32 = arith.constant 0 : i32
    %c0_i32_0 = arith.constant 0 : i32
    %c0_i32_1 = arith.constant 0 : i32
    return %c0_i32, %c0_i32_0 : i32, i32
  }
  func.func @transform_5(%arg0: i32) -> (i32, i32) {
    %c0_i32 = arith.constant 0 : i32
    %c0_i32_0 = arith.constant 0 : i32
    return %arg0, %c0_i32 : i32, i32
  }
}

</mosaic_0001>

<llo_original>
// kernel: feedforward.1
$region0: #{feedforward.1}
  #allocation0 [shape = 'u32[]', space=smem, size = 0x4, offset = 0x4, fixed_abs, tag = 'smem constant byte address 0x4 - core index']
  #allocation1 [shape = 'u32[144,128]{1,0:T(1,128)}', space=vmem, size = 0x12000, scoped, tag = 'internal scratch']
  %s0 = inlined_call_operand.vmem [shape: f32[16,128], index: 0, kind: input, shape index: {}]
  %s1 = inlined_call_operand.vmem [shape: f32[128,256], index: 1, kind: input, shape index: {}]
  %s2 = inlined_call_operand.vmem [shape: f32[1,256], index: 2, kind: input, shape index: {}]
  %s3 = inlined_call_operand.vmem [shape: f32[256,128], index: 3, kind: input, shape index: {}]
  %s4 = inlined_call_operand.vmem [shape: f32[1,128], index: 4, kind: input, shape index: {}]
  %s5 = inlined_call_operand.vmem [shape: f32[16,128], index: 5, kind: output, shape index: {}]
  %s6 = sld [smem:[#allocation0]]
  $region30: #{feedforward.1} parent=0
    _
  %s8 = ssub.s32 1, %s6
  %s9 = scalar_select 0, %s8, %s6
  // Predicated region
  $region2: #{feedforward.1} parent=0 // pred_check
    _
  $region3: #{feedforward.1} parent=0 // pred_check_branch
    %11 = sbr.rel (0) target = $region5
  $region4: #{feedforward.1} parent=0 // pred_region
    _
  $region5: #{feedforward.1} parent=0 // pred_fallthru
    _
  // Predicated region
  $region6: #{feedforward.1} parent=0 // pred_check
    _
  $region7: #{feedforward.1} parent=0 // pred_check_branch
    %13 = sbr.rel (0) target = $region9
  $region8: #{feedforward.1} parent=0 // pred_region
    _
  $region9: #{feedforward.1} parent=0 // pred_fallthru
    _
  // Predicated region
  $region10: #{feedforward.1} parent=0 // pred_check
    _
  $region11: #{feedforward.1} parent=0 // pred_check_branch
    %15 = sbr.rel (0) target = $region13
  $region12: #{feedforward.1} parent=0 // pred_region
    _
  $region13: #{feedforward.1} parent=0 // pred_fallthru
    _
  // Predicated region
  $region14: #{feedforward.1} parent=0 // pred_check
    _
  $region15: #{feedforward.1} parent=0 // pred_check_branch
    %17 = sbr.rel (0) target = $region17
  $region16: #{feedforward.1} parent=0 // pred_region
    _
  $region17: #{feedforward.1} parent=0 // pred_fallthru
    _
  // Predicated region
  $region18: #{feedforward.1} parent=0 // pred_check
    _
  $region19: #{feedforward.1} parent=0 // pred_check_branch
    %19 = sbr.rel (0) target = $region21
  $region20: #{feedforward.1} parent=0 // pred_region
    _
  $region21: #{feedforward.1} parent=0 // pred_fallthru
    _
  %v20 = vld [vmem:[%s0] sm:$0xff]
  %v21 = vld [vmem:[%s0 + $0x8] sm:$0xff]
  %v22 = vld [vmem:[%s1] sm:$0xff]
  %v23 = vld [vmem:[%s1 + $0x8] sm:$0xff]
  %v24 = vld [vmem:[%s1 + $0x10] sm:$0xff]
  %v25 = vld [vmem:[%s1 + $0x18] sm:$0xff]
  %v26 = vld [vmem:[%s1 + $0x20] sm:$0xff]
  %v27 = vld [vmem:[%s1 + $0x28] sm:$0xff]
  %v28 = vld [vmem:[%s1 + $0x30] sm:$0xff]
  %v29 = vld [vmem:[%s1 + $0x38] sm:$0xff]
  %v30 = vld [vmem:[%s1 + $0x40] sm:$0xff]
  %v31 = vld [vmem:[%s1 + $0x48] sm:$0xff]
  %v32 = vld [vmem:[%s1 + $0x50] sm:$0xff]
  %v33 = vld [vmem:[%s1 + $0x58] sm:$0xff]
  %v34 = vld [vmem:[%s1 + $0x60] sm:$0xff]
  %v35 = vld [vmem:[%s1 + $0x68] sm:$0xff]
  %v36 = vld [vmem:[%s1 + $0x70] sm:$0xff]
  %v37 = vld [vmem:[%s1 + $0x78] sm:$0xff]
  %v38 = vld [vmem:[%s1 + $0x80] sm:$0xff]
  %v39 = vld [vmem:[%s1 + $0x88] sm:$0xff]
  %v40 = vld [vmem:[%s1 + $0x90] sm:$0xff]
  %v41 = vld [vmem:[%s1 + $0x98] sm:$0xff]
  %v42 = vld [vmem:[%s1 + $0xa0] sm:$0xff]
  %v43 = vld [vmem:[%s1 + $0xa8] sm:$0xff]
  %v44 = vld [vmem:[%s1 + $0xb0] sm:$0xff]
  %v45 = vld [vmem:[%s1 + $0xb8] sm:$0xff]
  %v46 = vld [vmem:[%s1 + $0xc0] sm:$0xff]
  %v47 = vld [vmem:[%s1 + $0xc8] sm:$0xff]
  %v48 = vld [vmem:[%s1 + $0xd0] sm:$0xff]
  %v49 = vld [vmem:[%s1 + $0xd8] sm:$0xff]
  %v50 = vld [vmem:[%s1 + $0xe0] sm:$0xff]
  %v51 = vld [vmem:[%s1 + $0xe8] sm:$0xff]
  %v52 = vld [vmem:[%s1 + $0xf0] sm:$0xff]
  %v53 = vld [vmem:[%s1 + $0xf8] sm:$0xff]
  %v54 = vld [vmem:[%s2] sm:$0x3]
  %v56 = vlaneseq
  %v57 = vshrl.u32 %v56, 7
  %v58 = vsub.s32 0, %v57
  %v59 = vrot.slane %v54, %v58
  %v60 = vlaneseq
  %v61 = vshrl.u32 %v60, 7
  %v62 = vsub.s32 1, %v61
  %v63 = vrot.slane %v54, %v62
  %66 = vmatprep.subr.mxu0 %v23
  %67 = vmatpush1.msra.mxu0 %v22
  %68 = vmatprep.subr.mxu0 %v25
  %69 = vmatpush1.msra.mxu0 %v24
  %70 = vmatprep.subr.mxu0 %v27
  %71 = vmatpush1.msra.mxu0 %v26
  %72 = vmatprep.subr.mxu0 %v29
  %73 = vmatpush1.msra.mxu0 %v28
  %74 = vmatprep.subr.mxu0 %v31
  %75 = vmatpush1.msra.mxu0 %v30
  %76 = vmatprep.subr.mxu0 %v33
  %77 = vmatpush1.msra.mxu0 %v32
  %78 = vmatprep.subr.mxu0 %v35
  %79 = vmatpush1.msra.mxu0 %v34
  %80 = vmatprep.subr.mxu0 %v37
  %81 = vmatpush1.msra.mxu0 %v36
  %82 = vmatprep.subr.mxu0 %v39
  %83 = vmatpush1.msra.mxu0 %v38
  %84 = vmatprep.subr.mxu0 %v41
  %85 = vmatpush1.msra.mxu0 %v40
  %86 = vmatprep.subr.mxu0 %v43
  %87 = vmatpush1.msra.mxu0 %v42
  %88 = vmatprep.subr.mxu0 %v45
  %89 = vmatpush1.msra.mxu0 %v44
  %90 = vmatprep.subr.mxu0 %v47
  %91 = vmatpush1.msra.mxu0 %v46
  %92 = vmatprep.subr.mxu0 %v49
  %93 = vmatpush1.msra.mxu0 %v48
  %94 = vmatprep.subr.mxu0 %v51
  %95 = vmatpush1.msra.mxu0 %v50
  %96 = vmatprep.subr.mxu0 %v53
  %97 = vmatpush1.msra.mxu0 %v52
  %98 = vmatprep.subr.mxu0 0.0
  %99 = vmatpush1.msra.mxu0 0.0
  %100 = vmatprep.subr.mxu0 0.0
  %101 = vmatpush1.msra.mxu0 0.0
  %102 = vmatprep.subr.mxu0 0.0
  %103 = vmatpush1.msra.mxu0 0.0
  %104 = vmatprep.subr.mxu0 0.0
  %105 = vmatpush1.msra.mxu0 0.0
  %106 = vmatprep.subr.mxu0 0.0
  %107 = vmatpush1.msra.mxu0 0.0
  %108 = vmatprep.subr.mxu0 0.0
  %109 = vmatpush1.msra.mxu0 0.0
  %110 = vmatprep.subr.mxu0 0.0
  %111 = vmatpush1.msra.mxu0 0.0
  %112 = vmatprep.subr.mxu0 0.0
  %113 = vmatpush1.msra.mxu0 0.0
  %114 = vmatprep.subr.mxu0 0.0
  %115 = vmatpush1.msra.mxu0 0.0
  %116 = vmatprep.subr.mxu0 0.0
  %117 = vmatpush1.msra.mxu0 0.0
  %118 = vmatprep.subr.mxu0 0.0
  %119 = vmatpush1.msra.mxu0 0.0
  %120 = vmatprep.subr.mxu0 0.0
  %121 = vmatpush1.msra.mxu0 0.0
  %122 = vmatprep.subr.mxu0 0.0
  %123 = vmatpush1.msra.mxu0 0.0
  %124 = vmatprep.subr.mxu0 0.0
  %125 = vmatpush1.msra.mxu0 0.0
  %126 = vmatprep.subr.mxu0 0.0
  %127 = vmatpush1.msra.mxu0 0.0
  %128 = vmatprep.subr.mxu0 0.0
  %129 = vmatpush1.msra.mxu0 0.0
  %130 = vmatprep.mubr.f32.mxu0 0.0
  %131 = vmatmul.mubr.f32.gmra.mrb[0].mxu0 %v20
  %v132 = vpop.f32.mrb[0].mxu0
  %v133 = vadd.f32 %v59, %v132
  %v134 = vpop.f32.mrb[0].mxu0
  %v135 = vadd.f32 %v63, %v134
  %136 = vmatprep.mubr.f32.mxu0 0.0
  %137 = vmatmul.mubr.f32.gmra.mrb[0].mxu0 %v21
  %v138 = vpop.f32.mrb[0].mxu0
  %v139 = vadd.f32 %v59, %v138
  %v140 = vpop.f32.mrb[0].mxu0
  %v141 = vadd.f32 %v63, %v140
  %142 = vdwg.mxu0
  %v143 = vmul.f32 %v133, 0.5
  %v144 = vmul.f32 %v135, 0.5
  %v145 = vmul.f32 %v139, 0.5
  %v146 = vmul.f32 %v141, 0.5
  %v147 = vmul.f32 %v133, 0.70710677
  %v148 = vmul.f32 %v135, 0.70710677
  %v149 = vmul.f32 %v139, 0.70710677
  %v150 = vmul.f32 %v141, 0.70710677
  %v151 = verf.f32.pop %v147
  %v152 = verf.f32.pop %v148
  %v153 = verf.f32.pop %v149
  %v154 = verf.f32.pop %v150
  %v155 = vadd.f32 %v151, 1.0
  %v156 = vadd.f32 %v152, 1.0
  %v157 = vadd.f32 %v153, 1.0
  %v158 = vadd.f32 %v154, 1.0
  %v159 = vmul.f32 %v143, %v155
  %v160 = vmul.f32 %v144, %v156
  %v161 = vmul.f32 %v145, %v157
  %v162 = vmul.f32 %v146, %v158
  %v163 = vld [vmem:[%s3] sm:$0xff]
  %v164 = vld [vmem:[%s3 + $0x8] sm:$0xff]
  %v165 = vld [vmem:[%s3 + $0x10] sm:$0xff]
  %v166 = vld [vmem:[%s3 + $0x18] sm:$0xff]
  %v167 = vld [vmem:[%s3 + $0x20] sm:$0xff]
  %v168 = vld [vmem:[%s3 + $0x28] sm:$0xff]
  %v169 = vld [vmem:[%s3 + $0x30] sm:$0xff]
  %v170 = vld [vmem:[%s3 + $0x38] sm:$0xff]
  %v171 = vld [vmem:[%s3 + $0x40] sm:$0xff]
  %v172 = vld [vmem:[%s3 + $0x48] sm:$0xff]
  %v173 = vld [vmem:[%s3 + $0x50] sm:$0xff]
  %v174 = vld [vmem:[%s3 + $0x58] sm:$0xff]
  %v175 = vld [vmem:[%s3 + $0x60] sm:$0xff]
  %v176 = vld [vmem:[%s3 + $0x68] sm:$0xff]
  %v177 = vld [vmem:[%s3 + $0x70] sm:$0xff]
  %v178 = vld [vmem:[%s3 + $0x78] sm:$0xff]
  %v179 = vld [vmem:[%s3 + $0x80] sm:$0xff]
  %v180 = vld [vmem:[%s3 + $0x88] sm:$0xff]
  %v181 = vld [vmem:[%s3 + $0x90] sm:$0xff]
  %v182 = vld [vmem:[%s3 + $0x98] sm:$0xff]
  %v183 = vld [vmem:[%s3 + $0xa0] sm:$0xff]
  %v184 = vld [vmem:[%s3 + $0xa8] sm:$0xff]
  %v185 = vld [vmem:[%s3 + $0xb0] sm:$0xff]
  %v186 = vld [vmem:[%s3 + $0xb8] sm:$0xff]
  %v187 = vld [vmem:[%s3 + $0xc0] sm:$0xff]
  %v188 = vld [vmem:[%s3 + $0xc8] sm:$0xff]
  %v189 = vld [vmem:[%s3 + $0xd0] sm:$0xff]
  %v190 = vld [vmem:[%s3 + $0xd8] sm:$0xff]
  %v191 = vld [vmem:[%s3 + $0xe0] sm:$0xff]
  %v192 = vld [vmem:[%s3 + $0xe8] sm:$0xff]
  %v193 = vld [vmem:[%s3 + $0xf0] sm:$0xff]
  %v194 = vld [vmem:[%s3 + $0xf8] sm:$0xff]
  %v195 = vld [vmem:[%s4] sm:$0x1]
  %v197 = vlaneseq
  %v198 = vshrl.u32 %v197, 7
  %v199 = vsub.s32 0, %v198
  %v200 = vrot.slane %v195, %v199
  %202 = vmatprep.subr.mxu0 0.0
  %203 = vmatpush1.msra.mxu0 %v163
  %204 = vmatprep.subr.mxu0 0.0
  %205 = vmatpush1.msra.mxu0 %v164
  %206 = vmatprep.subr.mxu0 0.0
  %207 = vmatpush1.msra.mxu0 %v165
  %208 = vmatprep.subr.mxu0 0.0
  %209 = vmatpush1.msra.mxu0 %v166
  %210 = vmatprep.subr.mxu0 0.0
  %211 = vmatpush1.msra.mxu0 %v167
  %212 = vmatprep.subr.mxu0 0.0
  %213 = vmatpush1.msra.mxu0 %v168
  %214 = vmatprep.subr.mxu0 0.0
  %215 = vmatpush1.msra.mxu0 %v169
  %216 = vmatprep.subr.mxu0 0.0
  %217 = vmatpush1.msra.mxu0 %v170
  %218 = vmatprep.subr.mxu0 0.0
  %219 = vmatpush1.msra.mxu0 %v171
  %220 = vmatprep.subr.mxu0 0.0
  %221 = vmatpush1.msra.mxu0 %v172
  %222 = vmatprep.subr.mxu0 0.0
  %223 = vmatpush1.msra.mxu0 %v173
  %224 = vmatprep.subr.mxu0 0.0
  %225 = vmatpush1.msra.mxu0 %v174
  %226 = vmatprep.subr.mxu0 0.0
  %227 = vmatpush1.msra.mxu0 %v175
  %228 = vmatprep.subr.mxu0 0.0
  %229 = vmatpush1.msra.mxu0 %v176
  %230 = vmatprep.subr.mxu0 0.0
  %231 = vmatpush1.msra.mxu0 %v177
  %232 = vmatprep.subr.mxu0 0.0
  %233 = vmatpush1.msra.mxu0 %v178
  %234 = vmatprep.subr.mxu0 0.0
  %235 = vmatpush1.msra.mxu0 %v179
  %236 = vmatprep.subr.mxu0 0.0
  %237 = vmatpush1.msra.mxu0 %v180
  %238 = vmatprep.subr.mxu0 0.0
  %239 = vmatpush1.msra.mxu0 %v181
  %240 = vmatprep.subr.mxu0 0.0
  %241 = vmatpush1.msra.mxu0 %v182
  %242 = vmatprep.subr.mxu0 0.0
  %243 = vmatpush1.msra.mxu0 %v183
  %244 = vmatprep.subr.mxu0 0.0
  %245 = vmatpush1.msra.mxu0 %v184
  %246 = vmatprep.subr.mxu0 0.0
  %247 = vmatpush1.msra.mxu0 %v185
  %248 = vmatprep.subr.mxu0 0.0
  %249 = vmatpush1.msra.mxu0 %v186
  %250 = vmatprep.subr.mxu0 0.0
  %251 = vmatpush1.msra.mxu0 %v187
  %252 = vmatprep.subr.mxu0 0.0
  %253 = vmatpush1.msra.mxu0 %v188
  %254 = vmatprep.subr.mxu0 0.0
  %255 = vmatpush1.msra.mxu0 %v189
  %256 = vmatprep.subr.mxu0 0.0
  %257 = vmatpush1.msra.mxu0 %v190
  %258 = vmatprep.subr.mxu0 0.0
  %259 = vmatpush1.msra.mxu0 %v191
  %260 = vmatprep.subr.mxu0 0.0
  %261 = vmatpush1.msra.mxu0 %v192
  %262 = vmatprep.subr.mxu0 0.0
  %263 = vmatpush1.msra.mxu0 %v193
  %264 = vmatprep.subr.mxu0 0.0
  %265 = vmatpush1.msra.mxu0 %v194
  %266 = vmatprep.mubr.f32.mxu0 %v160
  %267 = vmatmul.mubr.f32.gmra.mrb[0].mxu0 %v159
  %v268 = vpop.f32.mrb[0].mxu0
  %v269 = vadd.f32 %v200, %v268
  %v270 = vpop.f32.mrb[0].mxu0
  %271 = vmatprep.mubr.f32.mxu0 %v162
  %272 = vmatmul.mubr.f32.gmra.mrb[0].mxu0 %v161
  %v273 = vpop.f32.mrb[0].mxu0
  %v274 = vadd.f32 %v200, %v273
  %v275 = vpop.f32.mrb[0].mxu0
  %276 = vdwg.mxu0
  %277 = vst [vmem:[%s5] sm:$0xff] %v269
  %278 = vst [vmem:[%s5 + $0x8] sm:$0xff] %v274
  // Predicated region
  $region22: #{feedforward.1} parent=0 // pred_check
    _
  $region23: #{feedforward.1} parent=0 // pred_check_branch
    %280 = sbr.rel (0) target = $region25
  $region24: #{feedforward.1} parent=0 // pred_region
    _
  $region25: #{feedforward.1} parent=0 // pred_fallthru
    _
  // Predicated region
  $region26: #{feedforward.1} parent=0 // pred_check
    _
  $region27: #{feedforward.1} parent=0 // pred_check_branch
    %282 = sbr.rel (0) target = $region29
  $region28: #{feedforward.1} parent=0 // pred_region
    _
  $region29: #{feedforward.1} parent=0 // pred_fallthru
    _

</llo_original>
